<compile_context>
chip_gen: v6e
topology: v6e:2x2x1
jax: 0.10.0
libtpu: 0.0.40
codegen_flags: <defaults>
</compile_context>

<pallas_src>
import math

import jax
import jax.numpy as jnp
from jax.experimental import pallas as pl
from jax.experimental.pallas import tpu as pltpu


def _make_kernel(pack: int):
    def kernel(nl_ref, freq_ref, phase_ref, group_ref, out_ref):
        # nl_ref:    (tile, pack)        f32  noise level(s) feeding each packed row
        # freq_ref:  (1, lane_width)     f32  duplicated/tiled frequency table
        # phase_ref: (1, lane_width)     f32  0 for the sin half, pi/2 for the cos half
        # group_ref: (1, lane_width)     i32  lane -> which packed batch row (unused if pack==1)
        # out_ref:   (tile, lane_width)  out_dtype
        nl = nl_ref[...]                                   # (tile, pack)
        nl_wide = nl[:, 0:1]                               # (tile, 1)
        for p in range(1, pack):                           # lane-expand nl to full width
            nl_wide = jnp.where(group_ref[...] == p, nl[:, p : p + 1], nl_wide)
        out = jnp.sin(nl_wide * freq_ref[...] + phase_ref[...])
        out_ref[...] = out.astype(out_ref.dtype)           # one full-lane-width store

    return kernel


def _choose_tile_rows(rows: int, lane_width: int, out_itemsize: int, requested: int) -> int:
    """Row-tile: multiple of 8 (or == rows), >=4 grid steps when possible, ~<=1 MiB/tile."""
    if rows <= 8:
        return rows
    tile = min(requested, rows)
    if rows >= 32:                                   # leave >= 4 grid steps (v7x: both TCs,
        tile = min(tile, -(-rows // 4))              # and writeback overlaps compute)
    row_bytes = max(1, lane_width * out_itemsize)
    tile = min(tile, max(8, (1 << 20) // row_bytes)) # cap one output tile at ~1 MiB
    return max(8, (tile // 8) * 8)


def positional_encoding(noise_level: jax.Array, dim: int, *, tile_rows: int = 512,
                        out_dtype=None) -> jax.Array:
    """noise_level: (B,) -> (B, dim) sinusoidal encoding [sin(enc) | cos(enc)]."""
    assert dim % 2 == 0, "dim must be even"
    count = dim // 2
    b = noise_level.shape[0]
    if out_dtype is None:
        out_dtype = noise_level.dtype   # module semantics; pass bf16 to halve writeback bytes

    # Lane-dense packing when dim divides 128 and the batch divides cleanly.
    if dim < 128 and 128 % dim == 0 and b % (128 // dim) == 0:
        pack = 128 // dim
    else:
        pack = 1  # TODO(synk): ragged batches with dim<128 fall back to masked sub-128 stores
    lane_width = pack * dim
    rows = b // pack

    nl2d = noise_level.astype(jnp.float32).reshape(rows, pack)

    # Constant tables (computed once per call, tiny).
    freq = jnp.exp((-math.log(10000.0) / count) * jnp.arange(count, dtype=jnp.float32))
    freq_row = jnp.tile(jnp.concatenate([freq, freq]), pack).reshape(1, lane_width)
    phase_row = jnp.tile(
        jnp.concatenate([jnp.zeros((count,), jnp.float32),
                         jnp.full((count,), jnp.pi / 2, jnp.float32)]),
        pack,
    ).reshape(1, lane_width)
    group_row = (jnp.arange(lane_width, dtype=jnp.int32) // dim).reshape(1, lane_width)

    tile = _choose_tile_rows(rows, lane_width, jnp.dtype(out_dtype).itemsize, tile_rows)
    grid = (pl.cdiv(rows, tile),)                    # ragged edge block masked by Pallas

    row_spec = pl.BlockSpec((1, lane_width), lambda i: (0, 0))   # resident constants
    out = pl.pallas_call(
        _make_kernel(pack),
        out_shape=jax.ShapeDtypeStruct((rows, lane_width), out_dtype),
        grid=grid,
        in_specs=[
            pl.BlockSpec((tile, pack), lambda i: (i, 0)),        # noise-level tile
            row_spec,                                            # freq_dup (tiled)
            row_spec,                                            # phase
            row_spec,                                            # lane -> packed-row group
        ],
        out_specs=pl.BlockSpec((tile, lane_width), lambda i: (i, 0)),
        compiler_params=pltpu.CompilerParams(
            dimension_semantics=("parallel",),                   # shard batch across TCs
        ),
    )(nl2d, freq_row, phase_row, group_row)

    return out.reshape(b, dim)                       # row-major identical -> free reshape


def _reference(noise_level, dim):
    count = dim // 2
    step = jnp.arange(count, dtype=noise_level.dtype) / count
    enc = noise_level[:, None] * jnp.exp(-math.log(10000.0) * step[None, :])
    return jnp.concatenate([jnp.sin(enc), jnp.cos(enc)], axis=-1)


if __name__ == "__main__":
    key = jax.random.PRNGKey(0)
    B, DIM = 8, 64
    noise_level = jax.random.uniform(key, (B,), dtype=jnp.float32)  # diffusion noise levels

    out = jax.block_until_ready(positional_encoding(noise_level, DIM))
    ref = _reference(noise_level, DIM)
    assert out.shape == (B, DIM) and out.dtype == jnp.float32
    assert jnp.allclose(out, ref, atol=1e-5, rtol=1e-5), "mismatch vs reference (packed path)"

    # Ragged batch: falls back to the unpacked layout; edge block is masked, no pad/slice.
    nl2 = jax.random.uniform(jax.random.PRNGKey(1), (19,), dtype=jnp.float32)
    out2 = jax.block_until_ready(positional_encoding(nl2, DIM, tile_rows=8))
    assert jnp.allclose(out2, _reference(nl2, DIM), atol=1e-5, rtol=1e-5), "mismatch (ragged batch)"

    # Multi-step packed grid + bf16 writeback (the writeback-bound fast path on v5e/v6e).
    nl3 = jax.random.uniform(jax.random.PRNGKey(2), (64,), dtype=jnp.float32)
    out3 = jax.block_until_ready(positional_encoding(nl3, DIM, out_dtype=jnp.bfloat16))
    assert out3.dtype == jnp.bfloat16
    assert jnp.allclose(out3.astype(jnp.float32), _reference(nl3, DIM),
                        atol=2e-2, rtol=2e-2), "mismatch (bf16 output)"

    print("KERNEL_OK")
</pallas_src>

<mosaic_0001>
module attributes {stable_mosaic.version = 11 : i64} {
  func.func @kernel(%arg0: i32, %arg1: memref<4x2xf32, #tpu.memory_space<vmem>>, %arg2: memref<1x128xf32, #tpu.memory_space<vmem>>, %arg3: memref<1x128xf32, #tpu.memory_space<vmem>>, %arg4: memref<1x128xi32, #tpu.memory_space<vmem>>, %arg5: memref<4x128xf32, #tpu.memory_space<vmem>>) attributes {dimension_semantics = [#tpu.dimension_semantics<parallel>], iteration_bounds = array<i64: 1>, scalar_prefetch = 0 : i64, scratch_operands = 0 : i64, tpu.core_type = #tpu.core_type<tc>, window_params = [{transform_indices = @transform_0, window_bounds = array<i64: 4, 2>}, {pipeline_mode = #tpu.pipeline_mode<synchronous>, transform_indices = @transform_1, window_bounds = array<i64: 1, 128>}, {pipeline_mode = #tpu.pipeline_mode<synchronous>, transform_indices = @transform_2, window_bounds = array<i64: 1, 128>}, {pipeline_mode = #tpu.pipeline_mode<synchronous>, transform_indices = @transform_3, window_bounds = array<i64: 1, 128>}, {transform_indices = @transform_4, window_bounds = array<i64: 4, 128>}]} {
    %c0 = arith.constant 0 : index
    %c0_0 = arith.constant 0 : index
    %0 = vector.load %arg1[%c0, %c0_0] : memref<4x2xf32, #tpu.memory_space<vmem>>, vector<4x2xf32>
    %1 = vector.extract_strided_slice %0 {offsets = [0, 0], sizes = [4, 1], strides = [1, 1]} : vector<4x2xf32> to vector<4x1xf32>
    %c0_1 = arith.constant 0 : index
    %c0_2 = arith.constant 0 : index
    %2 = vector.load %arg4[%c0_1, %c0_2] : memref<1x128xi32, #tpu.memory_space<vmem>>, vector<1x128xi32>
    %c1_i32 = arith.constant 1 : i32
    %3 = vector.broadcast %c1_i32 : i32 to vector<1x128xi32>
    %4 = arith.cmpi eq, %2, %3 : vector<1x128xi32>
    %5 = vector.extract_strided_slice %0 {offsets = [0, 1], sizes = [4, 1], strides = [1, 1]} : vector<4x2xf32> to vector<4x1xf32>
    %6 = vector.shape_cast %4 : vector<1x128xi1> to vector<1x128xi1>
    %7 = vector.broadcast %6 : vector<1x128xi1> to vector<4x128xi1>
    %8 = vector.shape_cast %5 : vector<4x1xf32> to vector<4x1xf32>
    %9 = vector.broadcast %8 : vector<4x1xf32> to vector<4x128xf32>
    %10 = vector.shape_cast %1 : vector<4x1xf32> to vector<4x1xf32>
    %11 = vector.broadcast %10 : vector<4x1xf32> to vector<4x128xf32>
    %12 = arith.select %7, %9, %11 : vector<4x128xi1>, vector<4x128xf32>
    %c0_3 = arith.constant 0 : index
    %c0_4 = arith.constant 0 : index
    %13 = vector.load %arg2[%c0_3, %c0_4] : memref<1x128xf32, #tpu.memory_space<vmem>>, vector<1x128xf32>
    %14 = vector.broadcast %13 : vector<1x128xf32> to vector<4x128xf32>
    %15 = arith.mulf %12, %14 : vector<4x128xf32>
    %c0_5 = arith.constant 0 : index
    %c0_6 = arith.constant 0 : index
    %16 = vector.load %arg3[%c0_5, %c0_6] : memref<1x128xf32, #tpu.memory_space<vmem>>, vector<1x128xf32>
    %17 = vector.broadcast %16 : vector<1x128xf32> to vector<4x128xf32>
    %18 = arith.addf %15, %17 : vector<4x128xf32>
    %19 = math.sin %18 : vector<4x128xf32>
    %c0_7 = arith.constant 0 : index
    %c0_8 = arith.constant 0 : index
    %20 = vector.load %arg5[%c0_7, %c0_8] : memref<4x128xf32, #tpu.memory_space<vmem>>, vector<4x128xf32>
    tpu.vector_store %arg5[%c0_7, %c0_8], %19 {strides = array<i32>} : memref<4x128xf32, #tpu.memory_space<vmem>>, vector<4x128xf32>,
    return
  }
  func.func @transform_0(%arg0: i32) -> (i32, i32) {
    %c0_i32 = arith.constant 0 : i32
    %c0_i32_0 = arith.constant 0 : i32
    return %arg0, %c0_i32 : i32, i32
  }
  func.func @transform_1(%arg0: i32) -> (i32, i32) {
    %c0_i32 = arith.constant 0 : i32
    %c0_i32_0 = arith.constant 0 : i32
    %c0_i32_1 = arith.constant 0 : i32
    return %c0_i32, %c0_i32_0 : i32, i32
  }
  func.func @transform_2(%arg0: i32) -> (i32, i32) {
    %c0_i32 = arith.constant 0 : i32
    %c0_i32_0 = arith.constant 0 : i32
    %c0_i32_1 = arith.constant 0 : i32
    return %c0_i32, %c0_i32_0 : i32, i32
  }
  func.func @transform_3(%arg0: i32) -> (i32, i32) {
    %c0_i32 = arith.constant 0 : i32
    %c0_i32_0 = arith.constant 0 : i32
    %c0_i32_1 = arith.constant 0 : i32
    return %c0_i32, %c0_i32_0 : i32, i32
  }
  func.func @transform_4(%arg0: i32) -> (i32, i32) {
    %c0_i32 = arith.constant 0 : i32
    %c0_i32_0 = arith.constant 0 : i32
    return %arg0, %c0_i32 : i32, i32
  }
}

</mosaic_0001>

<llo_original>
// kernel: tpu_custom_call.1
$region0: #{tpu_custom_call.1}
  #allocation0 [shape = 'u32[]', space=smem, size = 0x4, offset = 0x4, fixed_abs, tag = 'smem constant byte address 0x4 - core index']
  #allocation1 [shape = 'u32[144,128]{1,0:T(1,128)}', space=vmem, size = 0x12000, scoped, tag = 'internal scratch']
  %s0 = inlined_call_operand.vmem [shape: f32[4,2], index: 0, kind: input, shape index: {}]
  %s1 = inlined_call_operand.vmem [shape: f32[1,128], index: 1, kind: input, shape index: {}]
  %s2 = inlined_call_operand.vmem [shape: f32[1,128], index: 2, kind: input, shape index: {}]
  %s3 = inlined_call_operand.vmem [shape: s32[1,128], index: 3, kind: input, shape index: {}]
  %s4 = inlined_call_operand.hbm [shape: f32[4,128], index: 4, kind: output, shape index: {}]
  %s5 = sld [smem:[#allocation0]]
  $region26: #{tpu_custom_call.1} parent=0
    _
  %s7 = ssub.s32 1, %s5
  %s8 = scalar_select 0, %s7, %s5
  $region1: #{tpu_custom_call.1} parent=0
    #allocation2 [shape = 'u8[2048]{0}', space=vmem, size = 0x800, scoped, tag = 'output window, operand 0, single buffered']
    #allocation3 [shape = 's32[1]{0}', space=sflag, size = 0x4, scoped, tag = 'scoped memory for tpu_custom_call.1']
    %9 = vsyncpa [#allocation3], 0
    // Predicated region
    $region2: #{tpu_custom_call.1} parent=1 // pred_check
      _
    $region3: #{tpu_custom_call.1} parent=1 // pred_check_branch
      %11 = sbr.rel (0) target = $region5
    $region4: #{tpu_custom_call.1} parent=1 // pred_region
      _
    $region5: #{tpu_custom_call.1} parent=1 // pred_fallthru
      _
    // Predicated region
    $region6: #{tpu_custom_call.1} parent=1 // pred_check
      _
    $region7: #{tpu_custom_call.1} parent=1 // pred_check_branch
      %13 = sbr.rel (0) target = $region9
    $region8: #{tpu_custom_call.1} parent=1 // pred_region
      _
    $region9: #{tpu_custom_call.1} parent=1 // pred_fallthru
      _
    // Predicated region
    $region10: #{tpu_custom_call.1} parent=1 // pred_check
      _
    $region11: #{tpu_custom_call.1} parent=1 // pred_check_branch
      %15 = sbr.rel (0) target = $region13
    $region12: #{tpu_custom_call.1} parent=1 // pred_region
      _
    $region13: #{tpu_custom_call.1} parent=1 // pred_fallthru
      _
    // Predicated region
    $region14: #{tpu_custom_call.1} parent=1 // pred_check
      _
    $region15: #{tpu_custom_call.1} parent=1 // pred_check_branch
      %17 = sbr.rel (0) target = $region17
    $region16: #{tpu_custom_call.1} parent=1 // pred_region
      _
    $region17: #{tpu_custom_call.1} parent=1 // pred_fallthru
      _
    %v18 = vld [vmem:[%s0] sm:$0xf]
    %v19 = vld [vmem:[%s3] sm:$0x1]
    %vm20 = vcmp.eq.s32.totalorder %v19, 1
    %v21 = vsel %vm20, 1, 0
    %v22 = vlaneseq
    %v23 = vshrl.u32 %v22, 7
    %v24 = vsub.s32 0, %v23
    %v25 = vrot.slane %v21, %v24
    %vm26 = vcmp.eq.s32.totalorder %v25, 1
    %28 = vset.pattern.permute.xlu0 1
    %29 = vperm.xlu0 %28, %v18
    %v30 = vpop.permute.xlu0 %29
    %32 = vset.pattern.permute.xlu0 0
    %33 = vperm.xlu0 %32, %v18
    %v34 = vpop.permute.xlu0 %33
    %v36 = vsel %vm26, %v30, %v34
    %v37 = vld [vmem:[%s1] sm:$0x1]
    %v39 = vlaneseq
    %v40 = vshrl.u32 %v39, 7
    %v41 = vsub.s32 0, %v40
    %v42 = vrot.slane %v37, %v41
    %v44 = vmul.f32 %v36, %v42
    %v45 = vld [vmem:[%s2] sm:$0x1]
    %v47 = vlaneseq
    %v48 = vshrl.u32 %v47, 7
    %v49 = vsub.s32 0, %v48
    %v50 = vrot.slane %v45, %v49
    %v52 = vadd.f32 %v44, %v50
    %v53 = vand.u32 2147483647, %v52
    %vm54 = vcmp.le.f32.partialorder %v53, 0.7853982
    %vm55 = vcmp.lt.s32.totalorder %v52, 0
    %v56 = vand.u32 %v52, 2139095040
    %v57 = vshrl.u32 %v56, 23
    %v58 = vsub.s32 %v57, 127
    %v59 = vand.u32 2147483647, %v52
    %v60 = vand.u32 %v59, 8388607
    %v61 = vor.u32 %v60, 8388608
    %v62 = vsub.s32 0, %v61
    %v63 = vadd.s32 %v58, 1
    %vm64 = vcmp.gt.s32.totalorder %v63, 0
    %v65 = vsel %vm64, %v63, 0
    %v66 = vshrl.u32 %v65, 5
    %v67 = vand.u32 %v65, 31
    %v68 = vsub.s32 32, %v67
    %v69 = vshrl.u32 683565275, %v68
    %v70 = vshll.u32 683565275, %v67
    %v71 = vshrl.u32 2475754826, %v68
    %v72 = vor.u32 %v70, %v71
    %v73 = vshll.u32 2475754826, %v67
    %v74 = vshrl.u32 2131351028, %v68
    %v75 = vor.u32 %v73, %v74
    %v76 = vshll.u32 2131351028, %v67
    %v77 = vshrl.u32 2102212464, %v68
    %v78 = vor.u32 %v76, %v77
    %v79 = vshll.u32 2102212464, %v67
    %v80 = vshrl.u32 920167782, %v68
    %v81 = vor.u32 %v79, %v80
    %v82 = vshll.u32 920167782, %v67
    %v83 = vshrl.u32 1326507024, %v68
    %v84 = vor.u32 %v82, %v83
    %vm85 = vcmp.lt.s32.totalorder %v66, 1
    %vm86 = vcmp.lt.s32.totalorder %v66, 2
    %vm87 = vcmp.lt.s32.totalorder %v66, 3
    %vm88 = vcmp.lt.s32.totalorder %v66, 4
    %v89 = vsel %vm85, %v69, %v72
    %v90 = vsel %vm88, %v78, 2102212464
    %v91 = vsel %vm87, %v75, %v90
    %v92 = vsel %vm86, %v89, %v91
    %v93 = vsel %vm85, %v72, %v75
    %v94 = vsel %vm88, %v81, 920167782
    %v95 = vsel %vm87, %v78, %v94
    %v96 = vsel %vm86, %v93, %v95
    %v97 = vsel %vm85, %v75, %v78
    %v98 = vsel %vm88, %v84, 1326507024
    %v99 = vsel %vm87, %v81, %v98
    %v100 = vsel %vm86, %v97, %v99
    %v101 = vshll.u32 %v61, 8
    %v102 = vmul.u32.u64.compose %v101, %v100
    %v103 = vextract.low.u32 %v102
    %v104 = vextract.high.u32 %v102
    %v105 = vmul.u32.u64.compose %v101, %v96
    %v106 = vextract.low.u32 %v105
    %v107 = vextract.high.u32 %v105
    %v108 = vmul.u32 %v101, %v92
    %v109 = vadd.s32 %v104, %v106
    %vm110 = vc.u32 %v104, %v106
    %v111 = vadd.s32 %v107, 1
    %v112 = vsel %vm110, %v111, %v107
    %v113 = vadd.s32 %v108, %v112
    %v114 = vadd.s32 %v113, 536870912
    %v115 = vshrl.u32 %v114, 30
    %v116 = vshll.u32 %v115, 30
    %v117 = vsub.s32 %v113, %v116
    %vm118 = vcmp.lt.s32.totalorder %v117, 0
    %v119 = vsub.s32 0, %v117
    %v120 = vsel %vm118, %v119, %v117
    %v121 = vclz %v120
    %v122 = vsub.s32 %v121, 2
    %vm123 = vcmp.gt.s32.totalorder 0, %v122
    %v124 = vsel %vm123, 0, %v122
    %v125 = vsub.s32 32, %v124
    %v126 = vshll.u32 %v117, %v124
    %v127 = vshrl.u32 %v109, %v125
    %v128 = vor.u32 %v126, %v127
    %v129 = vsub.s32 4294967266, %v124
    %v130 = vadd.s32 %v129, 127
    %v131 = vshll.u32 %v130, 23
    %v132 = vor.u32 4788187, %v131
    %v133 = vand.u32 2147483647, %v132
    %v135 = vcvt.s32.f32 %v128
    %v136 = vmul.f32 %v135, %v133
    %v137 = vxor.u32 %v136, 2147483648
    %v138 = vsel %vm55, %v137, %v136
    %v139 = vsub.s32 4, %v115
    %v140 = vsel %vm55, %v139, %v115
    %v141 = vsel %vm54, %v52, %v138
    %v142 = vsel %vm54, 0, %v140
    %v143 = vcosq.f32.pop %v141
    %v144 = vsinq.f32.pop %v141
    %vm145 = vweird.f32 %v52
    %v146 = vadd.s32 %v142, 3
    %v147 = vand.u32 %v146, 3
    %vm148 = vcmp.lt.s32.totalorder %v147, 2
    %vm149 = vcmp.eq.s32.totalorder %v147, 0
    %v150 = vxor.u32 %v144, 2147483648
    %v151 = vsel %vm149, %v143, %v150
    %vm152 = vcmp.eq.s32.totalorder %v147, 2
    %v153 = vxor.u32 %v143, 2147483648
    %v154 = vsel %vm152, %v153, %v144
    %v155 = vsel %vm148, %v151, %v154
    %v156 = vsel %vm145, nan, %v155
    %157 = vst [vmem:[#allocation2] sm:$0xf] %v156
    // Predicated region
    $region18: #{tpu_custom_call.1} parent=1 // pred_check
      _
    $region19: #{tpu_custom_call.1} parent=1 // pred_check_branch
      %159 = sbr.rel (0) target = $region21
    $region20: #{tpu_custom_call.1} parent=1 // pred_region
      %s161 = ssub.s32 64, 64
      %162 = vsyncadd [#allocation3], %s161
      %s164 = sshll.u32 [#allocation2], 4
      %s165 = int_to_ptr.vmem [resolvable:$true] %s164
      %167 = dma.vmem_to_hbm [thread:$0]  %s165, 64, %s4, [#allocation3]
    $region21: #{tpu_custom_call.1} parent=1 // pred_fallthru
      _
    // Predicated region
    $region22: #{tpu_custom_call.1} parent=1 // pred_check
      _
    $region23: #{tpu_custom_call.1} parent=1 // pred_check_branch
      %169 = sbr.rel (0) target = $region25
    $region24: #{tpu_custom_call.1} parent=1 // pred_region
      %170 = dma.done [#allocation3], 64
    $region25: #{tpu_custom_call.1} parent=1 // pred_fallthru
      _
    %171 = vsyncpa [#allocation3], 1

</llo_original>
